<compile_context>
chip_gen: v6e
topology: v6e:2x2x1
jax: 0.10.0
libtpu: 0.0.40
codegen_flags: <defaults>
</compile_context>

<pallas_src>
import functools

import numpy as np
import jax
import jax.numpy as jnp
from jax.experimental import pallas as pl
from jax.experimental.pallas import tpu as pltpu


def _round_up(x, m):
    return pl.cdiv(x, m) * m


def _frame_tile(n_fft, n_frames):
    # Bigger tiles for the small, grid-overhead-dominated scales; 256 for 2048.
    target = int(min(2048, max(256, (1 << 19) // n_fft)))
    return int(min(target, _round_up(n_frames, 128)))


def _windowed_dft_basis_T(n_fft, f_pad):
    """(2*f_pad, n_fft) bf16 basis: rows [0:n_freq]        = hann *  cos,
                                     rows [f_pad:+n_freq]   = hann * (-sin)."""
    n_freq = n_fft // 2 + 1
    n = np.arange(n_fft)
    ang = 2.0 * np.pi * np.outer(np.arange(n_freq), n) / n_fft       # (n_freq, n_fft)
    win = 0.5 * (1.0 - np.cos(2.0 * np.pi * n / n_fft))              # periodic Hann
    basis = np.zeros((2 * f_pad, n_fft), np.float32)
    basis[:n_freq, :] = np.cos(ang) * win
    basis[f_pad:f_pad + n_freq, :] = -np.sin(ang) * win
    return jnp.asarray(basis, dtype=jnp.bfloat16)


def _frame_signal_T(x, n_fft, hop, tile_t):
    """torch.stft framing (center=True, reflect pad), transposed and padded:
       returns (B, n_fft, n_frames_pad) bf16, n_frames, n_frames_pad."""
    B, L = x.shape
    pad = n_fft // 2
    xp = jnp.pad(x, ((0, 0), (pad, pad)), mode="reflect")
    n_frames = 1 + L // hop
    n_frames_pad = int(_round_up(n_frames, tile_t))
    idx = np.arange(n_fft)[:, None] + hop * np.arange(n_frames)[None, :]
    fr = xp[:, idx]                                   # (B, n_fft, n_frames)
    # NOTE: frames are still materialized by an XLA gather; streaming the
    # hop-strided windows from HBM inside the kernel is a further optimization.
    fr = jnp.pad(fr, ((0, 0), (0, 0), (0, n_frames_pad - n_frames)))
    return fr.astype(jnp.bfloat16), n_frames, n_frames_pad


def _mag_stft_kernel(frames_ref, basis_ref, out_ref, *, f_pad):
    # One bf16 MXU matmul with f32 accumulation: (2*f_pad, n_fft) @ (n_fft, tile_t)
    s = jnp.dot(basis_ref[...], frames_ref[...],
                preferred_element_type=jnp.float32)
    re = s[:f_pad, :]                     # 128-aligned sublane slices
    im = s[f_pad:, :]
    out_ref[...] = jnp.sqrt(re * re + im * im)   # lane-dense (f_pad, tile_t) store


def magnitude_stft_pallas(frames_T, basis_T, f_pad, tile_t):
    """frames_T: (B, n_fft, n_frames_pad) bf16; basis_T: (2*f_pad, n_fft) bf16
       -> (B, f_pad, n_frames_pad) f32 magnitude spectrogram (freq x frames)."""
    B, n_fft, n_frames_pad = frames_T.shape
    two_f = basis_T.shape[0]
    grid = (B, n_frames_pad // tile_t)

    # Scoped-VMEM budget: double-buffered blocks + matmul/magnitude temporaries.
    basis_bytes = two_f * n_fft * 2
    frames_blk = n_fft * tile_t * 2
    out_blk = f_pad * tile_t * 4
    interm = (two_f + 2 * f_pad) * tile_t * 4
    need = 2 * (basis_bytes + frames_blk + out_blk) + interm
    vmem_limit = int(min(96 << 20, max(32 << 20, int(need * 1.5) + (4 << 20))))

    return pl.pallas_call(
        functools.partial(_mag_stft_kernel, f_pad=f_pad),
        out_shape=jax.ShapeDtypeStruct((B, f_pad, n_frames_pad), jnp.float32),
        grid_spec=pltpu.PrefetchScalarGridSpec(
            num_scalar_prefetch=0,
            grid=grid,
            in_specs=[
                # per-(batch, frame-tile) frames block
                pl.BlockSpec((None, n_fft, tile_t), lambda b, t: (b, 0, t)),
                # fused windowed DFT basis: constant index_map -> fetched once
                pl.BlockSpec((two_f, n_fft), lambda b, t: (0, 0)),
            ],
            out_specs=pl.BlockSpec((None, f_pad, tile_t), lambda b, t: (b, 0, t)),
        ),
        compiler_params=pltpu.CompilerParams(
            dimension_semantics=("parallel", "parallel"),
            vmem_limit_bytes=vmem_limit),
    )(frames_T, basis_T)


class MultiScaleSpectralLossPallas:
    """JAX/Pallas re-implementation of MultiScaleSpectralLoss.forward."""

    def __init__(self, max_n_fft=2048, num_scales=6, hop_lengths=None,
                 mag_w=1.0, logmag_w=0.0):
        assert max_n_fft // 2 ** (num_scales - 1) > 1
        self.n_ffts = [max_n_fft // 2 ** i for i in range(num_scales)]
        self.hop_lengths = ([n // 4 for n in self.n_ffts]
                            if not hop_lengths else hop_lengths)
        self.mag_w = mag_w
        self.logmag_w = logmag_w
        # deterministic "parameters": fused, Hann-windowed DFT basis per scale
        self.params = []
        for n_fft in self.n_ffts:
            n_freq = n_fft // 2 + 1
            f_pad = int(_round_up(n_freq, 128))
            self.params.append((_windowed_dft_basis_T(n_fft, f_pad), n_freq, f_pad))

    def __call__(self, x):
        # x: (B, L) float32 -> concatenation of flattened |STFT| per scale,
        # each in torch.stft's (B, n_freq, n_frames) layout.
        B, L = x.shape
        S = []
        for n_fft, hop, (basis_T, n_freq, f_pad) in zip(
                self.n_ffts, self.hop_lengths, self.params):
            n_frames = 1 + L // hop
            tile_t = _frame_tile(n_fft, n_frames)
            frames_T, n_frames, _ = _frame_signal_T(x, n_fft, hop, tile_t)
            mag = magnitude_stft_pallas(frames_T, basis_T, f_pad, tile_t)
            mag = mag[:, :n_freq, :n_frames]          # (B, n_freq, n_frames)
            S.append(mag.reshape(-1))
        return jnp.concatenate(S)


if __name__ == "__main__":
    # Small config consistent with the module: n_ffts = [64, 32, 16], hops = n//4.
    loss = MultiScaleSpectralLossPallas(max_n_fft=64, num_scales=3)

    key = jax.random.PRNGKey(0)
    B, L = 2, 256
    x = jax.random.normal(key, (B, L), dtype=jnp.float32)

    out = loss(x)
    jax.block_until_ready(out)

    # Check 1 (semantics): pure-JAX f32 rfft STFT reference.  Tolerance is loose
    # because the kernel feeds the MXU bf16 operands (accumulation stays f32).
    refs = []
    for n_fft, hop in zip(loss.n_ffts, loss.hop_lengths):
        pad = n_fft // 2
        xp = jnp.pad(x, ((0, 0), (pad, pad)), mode="reflect")
        n_frames = 1 + L // hop
        idx = np.arange(n_frames)[:, None] * hop + np.arange(n_fft)[None, :]
        frames = xp[:, idx]                                    # (B, n_frames, n_fft)
        w = 0.5 * (1.0 - jnp.cos(2.0 * jnp.pi * jnp.arange(n_fft) / n_fft))
        spec = jnp.abs(jnp.fft.rfft(frames * w, axis=-1))      # (B, n_frames, n_freq)
        refs.append(jnp.transpose(spec, (0, 2, 1)).reshape(-1))
    ref = jnp.concatenate(refs)
    assert out.shape == ref.shape, (out.shape, ref.shape)
    np.testing.assert_allclose(np.asarray(out), np.asarray(ref),
                               rtol=5e-2, atol=1e-1)

    # Check 2 (kernel mechanics): same bf16-quantized operands, plain-JAX f32 math.
    refs2 = []
    for n_fft, hop, (basis_T, n_freq, f_pad) in zip(
            loss.n_ffts, loss.hop_lengths, loss.params):
        frames_T, n_frames, _ = _frame_signal_T(x, n_fft, hop, 128)
        s = jnp.einsum("fn,bnt->bft", basis_T.astype(jnp.float32),
                       frames_T.astype(jnp.float32))
        mag = jnp.sqrt(s[:, :f_pad, :] ** 2 + s[:, f_pad:, :] ** 2)
        refs2.append(mag[:, :n_freq, :n_frames].reshape(-1))
    ref2 = jnp.concatenate(refs2)
    np.testing.assert_allclose(np.asarray(out), np.asarray(ref2),
                               rtol=2e-3, atol=2e-3)

    print("KERNEL_OK")
</pallas_src>

<mosaic_0001>
module attributes {stable_mosaic.version = 11 : i64} {
  func.func @_mag_stft_kernel(%arg0: i32, %arg1: i32, %arg2: memref<1x64x128xbf16, #tpu.memory_space<vmem>>, %arg3: memref<256x64xbf16, #tpu.memory_space<vmem>>, %arg4: memref<1x128x128xf32, #tpu.memory_space<vmem>>) attributes {dimension_semantics = [#tpu.dimension_semantics<parallel>, #tpu.dimension_semantics<parallel>], iteration_bounds = array<i64: 2, 1>, scalar_prefetch = 0 : i64, scratch_operands = 0 : i64, tpu.core_type = #tpu.core_type<tc>, window_params = [{transform_indices = @transform_0, window_bounds = array<i64: 1, 64, 128>}, {pipeline_mode = #tpu.pipeline_mode<synchronous>, transform_indices = @transform_1, window_bounds = array<i64: 256, 64>}, {transform_indices = @transform_2, window_bounds = array<i64: 1, 128, 128>}]} {
    %c0 = arith.constant 0 : index
    %c0_0 = arith.constant 0 : index
    %0 = vector.load %arg3[%c0, %c0_0] : memref<256x64xbf16, #tpu.memory_space<vmem>>, vector<256x64xbf16>
    %c0_1 = arith.constant 0 : index
    %c0_2 = arith.constant 0 : index
    %c0_3 = arith.constant 0 : index
    %1 = vector.load %arg2[%c0_1, %c0_2, %c0_3] : memref<1x64x128xbf16, #tpu.memory_space<vmem>>, vector<1x64x128xbf16>
    %2 = vector.shape_cast %1 : vector<1x64x128xbf16> to vector<64x128xbf16>
    %cst = arith.constant dense<0.000000e+00> : vector<256x128xf32>
    %3 = tpu.matmul %0, %2, %cst {dimension_numbers = #tpu.dot_dimension_numbers<[1], [0], [0], [1], [0, 0, 1, 1], [], []>} : vector<256x64xbf16>, vector<64x128xbf16>, vector<256x128xf32> -> vector<256x128xf32>
    %4 = vector.extract_strided_slice %3 {offsets = [0, 0], sizes = [128, 128], strides = [1, 1]} : vector<256x128xf32> to vector<128x128xf32>
    %5 = vector.extract_strided_slice %3 {offsets = [128, 0], sizes = [128, 128], strides = [1, 1]} : vector<256x128xf32> to vector<128x128xf32>
    %6 = arith.mulf %4, %4 : vector<128x128xf32>
    %7 = arith.mulf %5, %5 : vector<128x128xf32>
    %8 = arith.addf %6, %7 : vector<128x128xf32>
    %9 = math.sqrt %8 : vector<128x128xf32>
    %c0_4 = arith.constant 0 : index
    %c0_5 = arith.constant 0 : index
    %c0_6 = arith.constant 0 : index
    %10 = vector.load %arg4[%c0_4, %c0_5, %c0_6] : memref<1x128x128xf32, #tpu.memory_space<vmem>>, vector<1x128x128xf32>
    %11 = vector.shape_cast %10 : vector<1x128x128xf32> to vector<128x128xf32>
    %12 = vector.shape_cast %9 : vector<128x128xf32> to vector<1x128x128xf32>
    tpu.vector_store %arg4[%c0_4, %c0_5, %c0_6], %12 {strides = array<i32>} : memref<1x128x128xf32, #tpu.memory_space<vmem>>, vector<1x128x128xf32>,
    return
  }
  func.func @transform_0(%arg0: i32, %arg1: i32) -> (i32, i32, i32) {
    %c0_i32 = arith.constant 0 : i32
    %c0_i32_0 = arith.constant 0 : i32
    return %arg0, %c0_i32, %arg1 : i32, i32, i32
  }
  func.func @transform_1(%arg0: i32, %arg1: i32) -> (i32, i32) {
    %c0_i32 = arith.constant 0 : i32
    %c0_i32_0 = arith.constant 0 : i32
    %c0_i32_1 = arith.constant 0 : i32
    return %c0_i32, %c0_i32_0 : i32, i32
  }
  func.func @transform_2(%arg0: i32, %arg1: i32) -> (i32, i32, i32) {
    %c0_i32 = arith.constant 0 : i32
    %c0_i32_0 = arith.constant 0 : i32
    return %arg0, %c0_i32, %arg1 : i32, i32, i32
  }
}

</mosaic_0001>

<llo_original>
// kernel: tpu_custom_call.1
$region0: #{tpu_custom_call.1}
  #allocation0 [shape = 'u32[]', space=smem, size = 0x4, offset = 0x4, fixed_abs, tag = 'smem constant byte address 0x4 - core index']
  #allocation1 [shape = 'u32[144,128]{1,0:T(1,128)}', space=vmem, size = 0x12000, scoped, tag = 'internal scratch']
  %s0 = inlined_call_operand.vmem [shape: bf16[2,64,128], index: 0, kind: input, shape index: {}]
  %s1 = inlined_call_operand.vmem [shape: bf16[256,64], index: 1, kind: input, shape index: {}]
  %s2 = inlined_call_operand.hbm [shape: f32[2,128,128], index: 2, kind: output, shape index: {}]
  %s3 = sld [smem:[#allocation0]]
  $region41: #{tpu_custom_call.1} parent=0
    _
  %s5 = ssub.s32 1, %s3
  %s6 = scalar_select 0, %s5, %s3
  $region1: #{tpu_custom_call.1} parent=0
    #allocation2 [shape = 'u8[131072]{0}', space=vmem, size = 0x20000, scoped, tag = 'output window, operand 0']
    #allocation3 [shape = 's32[2]{0}', space=sflag, size = 0x8, scoped, tag = 'scoped memory for tpu_custom_call.1']
    %7 = vsyncpa [#allocation3], 0
    %s8 = scalar_lea.sflag [#allocation3], 1
    %9 = vsyncpa %s8, 0
    loop: start=0, step=1, limit=4
    $region2: #{tpu_custom_call.1} parent=1 // loop_pre_header
      _
    $region3: #{tpu_custom_call.1} parent=1 // loop_header
      %s11 = sphi 0, %s15
      %p12 = scmp.ge.s32.totalorder %s11, 4
      %s18 = sphi 0, %s30
      %s19 = sphi 0, %s26
      %s20 = sphi 0, %s18
      %s21 = sphi 0, %s19
      %s22 = sphi 0, %s20
      %s23 = sphi 0, %s21
      %s35 = sphi 0, %s37
      %s38 = sphi 0, %s35
      %s39 = sphi 0, %s38
      %s55 = sphi 0, %s39
      %s59 = sphi 0, %s59
      %s61 = sphi 0, %s59
      %s62 = sphi 0, %s61
      %s76 = sphi 0, %s62
      %s84 = sphi 0, %s86
      %s87 = sphi 0, %s84
      %s88 = sphi 0, %s87
      %s104 = sphi 0, %s88
    $region4: #{tpu_custom_call.1} parent=1 // loop_header_branch
      %14 = sbr.rel (%p12) target = $region8
    $region5: #{tpu_custom_call.1} parent=1 // loop_body
      %s16 = ssub.s32 %s11, 1
      %s17 = ssub.s32 %s11, 2
      %s24 = sadd.s32 1, %s19
      %p25 = scmp.ge.s32.totalorder %s24, 1
      %s26 = scalar_select %p25, 0, %s24
      %s27 = sadd.s32 1, %s18
      %s28 = scalar_select %p25, %s27, %s18
      %p29 = scmp.ge.s32.totalorder %s28, 2
      %s30 = scalar_select %p29, 0, %s28
      %s31 = ssub.s32 %s18, %s30
      %s32 = ssub.s32 %s19, %s26
      %s33 = sor.u32 %s31, %s32
      %p34 = scmp.eq.s32.totalorder %s33, 0
      %s36 = sadd.s32 %s35, 1
      %s37 = scalar_select %p34, %s35, %s36
      %p40 = pneg %p34
      %p41 = scmp.eq.s32.totalorder %s11, 1
      %p42 = por %p40, %p41
      %p43 = scmp.ne.s32.totalorder %s35, %s38
      %p44 = scmp.eq.s32.totalorder %s11, 0
      %p45 = por %p43, %p44
      %p46 = scmp.ne.s32.totalorder %s35, %s38
      %p47 = scmp.eq.s32.totalorder %s16, 1
      %p48 = por %p46, %p47
      %p49 = scmp.ne.s32.totalorder %s38, %s39
      %p50 = scmp.eq.s32.totalorder %s16, 0
      %p51 = por %p49, %p50
      %p52 = scmp.ne.s32.totalorder %s38, %s39
      %p53 = scmp.eq.s32.totalorder %s17, 1
      %p54 = por %p52, %p53
      %p56 = scmp.ne.s32.totalorder %s39, %s55
      %p57 = scmp.eq.s32.totalorder %s17, 0
      %p58 = por %p56, %p57
      %s60 = sadd.s32 %s59, 1
      %p63 = scmp.eq.s32.totalorder %s11, 1
      %p64 = scmp.ne.s32.totalorder %s59, %s61
      %p65 = scmp.eq.s32.totalorder %s11, 0
      %p66 = por %p64, %p65
      %p67 = scmp.ne.s32.totalorder %s59, %s61
      %p68 = scmp.eq.s32.totalorder %s16, 1
      %p69 = por %p67, %p68
      %p70 = scmp.ne.s32.totalorder %s61, %s62
      %p71 = scmp.eq.s32.totalorder %s16, 0
      %p72 = por %p70, %p71
      %p73 = scmp.ne.s32.totalorder %s61, %s62
      %p74 = scmp.eq.s32.totalorder %s17, 1
      %p75 = por %p73, %p74
      %p77 = scmp.ne.s32.totalorder %s62, %s76
      %p78 = scmp.eq.s32.totalorder %s17, 0
      %p79 = por %p77, %p78
      %s80 = ssub.s32 %s18, %s30
      %s81 = ssub.s32 %s19, %s26
      %s82 = sor.u32 %s80, %s81
      %p83 = scmp.eq.s32.totalorder %s82, 0
      %s85 = sadd.s32 %s84, 1
      %s86 = scalar_select %p83, %s84, %s85
      %p89 = pneg %p83
      %p90 = scmp.eq.s32.totalorder %s11, 1
      %p91 = por %p89, %p90
      %p92 = scmp.ne.s32.totalorder %s84, %s87
      %p93 = scmp.eq.s32.totalorder %s11, 0
      %p94 = por %p92, %p93
      %p95 = scmp.ne.s32.totalorder %s84, %s87
      %p96 = scmp.eq.s32.totalorder %s16, 1
      %p97 = por %p95, %p96
      %p98 = scmp.ne.s32.totalorder %s87, %s88
      %p99 = scmp.eq.s32.totalorder %s16, 0
      %p100 = por %p98, %p99
      %p101 = scmp.ne.s32.totalorder %s87, %s88
      %p102 = scmp.eq.s32.totalorder %s17, 1
      %p103 = por %p101, %p102
      %p105 = scmp.ne.s32.totalorder %s88, %s104
      %p106 = scmp.eq.s32.totalorder %s17, 0
      %p107 = por %p105, %p106
      %p108 = scmp.le.s32.totalorder 1, %s11
      %p109 = scmp.lt.s32.totalorder %s11, 3
      %p110 = pnand %p108, %p109
      %p111 = pneg %p110
      // Predicated region
      $region9: #{tpu_custom_call.1} parent=5 // pred_check
        _
      $region10: #{tpu_custom_call.1} parent=5 // pred_check_branch
        %113 = sbr.rel (%p110) target = $region12
      $region11: #{tpu_custom_call.1} parent=5 // pred_region
        %s114 = ssub.s32 %s11, 1
        // Predicated region
        $region13: #{tpu_custom_call.1} parent=11 // pred_check
          %p115 = pneg %p72
        $region14: #{tpu_custom_call.1} parent=11 // pred_check_branch
          %117 = sbr.rel (%p115) target = $region16
        $region15: #{tpu_custom_call.1} parent=11 // pred_region
          _
        $region16: #{tpu_custom_call.1} parent=11 // pred_fallthru
          _
      $region12: #{tpu_custom_call.1} parent=5 // pred_fallthru
        _
      %p118 = scmp.lt.s32.totalorder %s11, 2
      // Predicated region
      $region17: #{tpu_custom_call.1} parent=5 // pred_check
        %p119 = pneg %p118
      $region18: #{tpu_custom_call.1} parent=5 // pred_check_branch
        %121 = sbr.rel (%p119) target = $region20
      $region19: #{tpu_custom_call.1} parent=5 // pred_region
        // Predicated region
        $region21: #{tpu_custom_call.1} parent=19 // pred_check
          %p122 = pneg %p45
        $region22: #{tpu_custom_call.1} parent=19 // pred_check_branch
          %124 = sbr.rel (%p122) target = $region24
        $region23: #{tpu_custom_call.1} parent=19 // pred_region
          %p125 = scmp.lt.s32.totalorder %s18, 1
          %s126 = scalar_select %p125, %s18, 1
          %p127 = scmp.lt.s32.totalorder %s19, 0
          %s128 = scalar_select %p127, %s19, 0
          %s129 = smul.addr %s126, 8
          %s130 = sadd.s32 %s128, %s129
          %s131 = smul.addr %s130, 4
          %s132 = scalar_lea.vmem %s0, %s131
        $region24: #{tpu_custom_call.1} parent=19 // pred_fallthru
          _
      $region20: #{tpu_custom_call.1} parent=5 // pred_fallthru
        _
      %p133 = scmp.le.s32.totalorder 1, %s11
      %p134 = scmp.lt.s32.totalorder %s11, 3
      %p135 = pnand %p133, %p134
      %p136 = pneg %p135
      // Predicated region
      $region25: #{tpu_custom_call.1} parent=5 // pred_check
        _
      $region26: #{tpu_custom_call.1} parent=5 // pred_check_branch
        %138 = sbr.rel (%p135) target = $region28
      $region27: #{tpu_custom_call.1} parent=5 // pred_region
        %s139 = ssub.s32 %s11, 1
        %p140 = scmp.lt.s32.totalorder %s20, 1
        %s141 = scalar_select %p140, %s20, 1
        %p142 = scmp.lt.s32.totalorder %s21, 0
        %s143 = scalar_select %p142, %s21, 0
        %s144 = smul.addr %s141, 8
        %s145 = sadd.s32 %s143, %s144
        %s146 = smul.addr %s145, 4
        %s147 = scalar_lea.vmem %s0, %s146
        %p148 = pneg %p51
        %p149 = pneg %p48
        %p150 = pneg %p72
        %p151 = pneg %p69
        %p152 = pneg %p100
        %p153 = pneg %p97
        %s154 = sand.u32 %s87, 1
        %s155 = scalar_lea.sflag [#allocation3], %s154
        %s156 = sand.u32 %s87, 1
        %s157 = smul.addr %s156, 128
        %s158 = scalar_lea.vmem [#allocation2], %s157
        %p159 = scmp.lt.s32.totalorder %s20, 1
        %s160 = scalar_select %p159, %s20, 1
        %p161 = scmp.lt.s32.totalorder %s21, 0
        %s162 = scalar_select %p161, %s21, 0
        %s163 = smul.addr %s160, 8
        %s164 = sadd.s32 %s162, %s163
        %s165 = smul.addr %s164, 4
        %s166 = scalar_lea.vmem %s0, %s165
        %v168 = vld [vmem:[%s1] sm:$0xf]
        %v169 = vld [vmem:[%s1 + $0x4] sm:$0xf]
        %v170 = vld [vmem:[%s1 + $0x8] sm:$0xf]
        %v171 = vld [vmem:[%s1 + $0xc] sm:$0xf]
        %v172 = vld [vmem:[%s1 + $0x10] sm:$0xf]
        %v173 = vld [vmem:[%s1 + $0x14] sm:$0xf]
        %v174 = vld [vmem:[%s1 + $0x18] sm:$0xf]
        %v175 = vld [vmem:[%s1 + $0x1c] sm:$0xf]
        %v176 = vld [vmem:[%s1 + $0x20] sm:$0xf]
        %v177 = vld [vmem:[%s1 + $0x24] sm:$0xf]
        %v178 = vld [vmem:[%s1 + $0x28] sm:$0xf]
        %v179 = vld [vmem:[%s1 + $0x2c] sm:$0xf]
        %v180 = vld [vmem:[%s1 + $0x30] sm:$0xf]
        %v181 = vld [vmem:[%s1 + $0x34] sm:$0xf]
        %v182 = vld [vmem:[%s1 + $0x38] sm:$0xf]
        %v183 = vld [vmem:[%s1 + $0x3c] sm:$0xf]
        %v184 = vld [vmem:[%s1 + $0x40] sm:$0xf]
        %v185 = vld [vmem:[%s1 + $0x44] sm:$0xf]
        %v186 = vld [vmem:[%s1 + $0x48] sm:$0xf]
        %v187 = vld [vmem:[%s1 + $0x4c] sm:$0xf]
        %v188 = vld [vmem:[%s1 + $0x50] sm:$0xf]
        %v189 = vld [vmem:[%s1 + $0x54] sm:$0xf]
        %v190 = vld [vmem:[%s1 + $0x58] sm:$0xf]
        %v191 = vld [vmem:[%s1 + $0x5c] sm:$0xf]
        %v192 = vld [vmem:[%s1 + $0x60] sm:$0xf]
        %v193 = vld [vmem:[%s1 + $0x64] sm:$0xf]
        %v194 = vld [vmem:[%s1 + $0x68] sm:$0xf]
        %v195 = vld [vmem:[%s1 + $0x6c] sm:$0xf]
        %v196 = vld [vmem:[%s1 + $0x70] sm:$0xf]
        %v197 = vld [vmem:[%s1 + $0x74] sm:$0xf]
        %v198 = vld [vmem:[%s1 + $0x78] sm:$0xf]
        %v199 = vld [vmem:[%s1 + $0x7c] sm:$0xf]
        %v200 = vld [vmem:[%s166] sm:$0xf]
        %v201 = vld [vmem:[%s166 + $0x4] sm:$0xf]
        %v202 = vld [vmem:[%s166 + $0x8] sm:$0xf]
        %v203 = vld [vmem:[%s166 + $0xc] sm:$0xf]
        %v204 = vld [vmem:[%s166 + $0x10] sm:$0xf]
        %v205 = vld [vmem:[%s166 + $0x14] sm:$0xf]
        %v206 = vld [vmem:[%s166 + $0x18] sm:$0xf]
        %v207 = vld [vmem:[%s166 + $0x1c] sm:$0xf]
        %v240 = vunpack.c.l.b16 %v168
        %v241 = vunpack.c.l.b16 %v169
        %v242 = vunpack.c.l.b16 %v170
        %v243 = vunpack.c.l.b16 %v171
        %v244 = vunpack.c.l.b16 %v172
        %v245 = vunpack.c.l.b16 %v173
        %v246 = vunpack.c.l.b16 %v174
        %v247 = vunpack.c.l.b16 %v175
        %v248 = vunpack.c.l.b16 %v176
        %v249 = vunpack.c.l.b16 %v177
        %v250 = vunpack.c.l.b16 %v178
        %v251 = vunpack.c.l.b16 %v179
        %v252 = vunpack.c.l.b16 %v180
        %v253 = vunpack.c.l.b16 %v181
        %v254 = vunpack.c.l.b16 %v182
        %v255 = vunpack.c.l.b16 %v183
        %v256 = vunpack.c.l.b16 %v184
        %v257 = vunpack.c.l.b16 %v185
        %v258 = vunpack.c.l.b16 %v186
        %v259 = vunpack.c.l.b16 %v187
        %v260 = vunpack.c.l.b16 %v188
        %v261 = vunpack.c.l.b16 %v189
        %v262 = vunpack.c.l.b16 %v190
        %v263 = vunpack.c.l.b16 %v191
        %v264 = vunpack.c.l.b16 %v192
        %v265 = vunpack.c.l.b16 %v193
        %v266 = vunpack.c.l.b16 %v194
        %v267 = vunpack.c.l.b16 %v195
        %v268 = vunpack.c.l.b16 %v196
        %v269 = vunpack.c.l.b16 %v197
        %v270 = vunpack.c.l.b16 %v198
        %v271 = vunpack.c.l.b16 %v199
        %v272 = vpack.c.b16 %v241, %v240
        %v273 = vpack.c.b16 %v243, %v242
        %v274 = vpack.c.b16 %v245, %v244
        %v275 = vpack.c.b16 %v247, %v246
        %v276 = vpack.c.b16 %v249, %v248
        %v277 = vpack.c.b16 %v251, %v250
        %v278 = vpack.c.b16 %v253, %v252
        %v279 = vpack.c.b16 %v255, %v254
        %v280 = vpack.c.b16 %v257, %v256
        %v281 = vpack.c.b16 %v259, %v258
        %v282 = vpack.c.b16 %v261, %v260
        %v283 = vpack.c.b16 %v263, %v262
        %v284 = vpack.c.b16 %v265, %v264
        %v285 = vpack.c.b16 %v267, %v266
        %v286 = vpack.c.b16 %v269, %v268
        %v287 = vpack.c.b16 %v271, %v270
        %v296 = vunpack.c.l.b16 %v200
        %v297 = vunpack.c.l.b16 %v201
        %v298 = vunpack.c.l.b16 %v202
        %v299 = vunpack.c.l.b16 %v203
        %v300 = vunpack.c.l.b16 %v204
        %v301 = vunpack.c.l.b16 %v205
        %v302 = vunpack.c.l.b16 %v206
        %v303 = vunpack.c.l.b16 %v207
        %v304 = vpack.c.b16 %v297, %v296
        %v305 = vpack.c.b16 %v299, %v298
        %v306 = vpack.c.b16 %v301, %v300
        %v307 = vpack.c.b16 %v303, %v302
        %vm312 = vcmask 523264
        %v314 = vsel %vm312, %v272, 0
        %v317 = vsel %vm312, %v273, 0
        %v320 = vsel %vm312, %v274, 0
        %v323 = vsel %vm312, %v275, 0
        %v326 = vsel %vm312, %v276, 0
        %v329 = vsel %vm312, %v277, 0
        %v332 = vsel %vm312, %v278, 0
        %v335 = vsel %vm312, %v279, 0
        %v338 = vsel %vm312, %v280, 0
        %v341 = vsel %vm312, %v281, 0
        %v344 = vsel %vm312, %v282, 0
        %v347 = vsel %vm312, %v283, 0
        %v350 = vsel %vm312, %v284, 0
        %v353 = vsel %vm312, %v285, 0
        %v356 = vsel %vm312, %v286, 0
        %v359 = vsel %vm312, %v287, 0
        %361 = vmatprep.subr.bf16.mxu0 0
        %362 = vmatpush1.bf16.msra.mxu0 0
        %363 = vmatprep.subr.bf16.mxu0 0
        %364 = vmatpush1.bf16.msra.mxu0 0
        %365 = vmatprep.subr.bf16.mxu0 0
        %366 = vmatpush1.bf16.msra.mxu0 0
        %367 = vmatprep.subr.bf16.mxu0 0
        %368 = vmatpush1.bf16.msra.mxu0 0
        %369 = vmatprep.subr.bf16.mxu0 0
        %370 = vmatpush1.bf16.msra.mxu0 %v307
        %371 = vmatprep.subr.bf16.mxu0 0
        %372 = vmatpush1.bf16.msra.mxu0 %v306
        %373 = vmatprep.subr.bf16.mxu0 0
        %374 = vmatpush1.bf16.msra.mxu0 %v305
        %375 = vmatprep.subr.bf16.mxu0 0
        %376 = vmatpush1.bf16.msra.mxu0 %v304
        %377 = vmatprep.subr.bf16.mxu0 0
        %378 = vmatpush2.bf16.msra.mxu0 0
        %379 = vmatprep.subr.bf16.mxu0 0
        %380 = vmatpush2.bf16.msra.mxu0 0
        %381 = vmatprep.subr.bf16.mxu0 0
        %382 = vmatpush2.bf16.msra.mxu0 0
        %383 = vmatprep.subr.bf16.mxu0 0
        %384 = vmatpush2.bf16.msra.mxu0 0
        %385 = vmatprep.subr.bf16.mxu0 0
        %386 = vmatpush2.bf16.msra.mxu0 0
        %387 = vmatprep.subr.bf16.mxu0 0
        %388 = vmatpush2.bf16.msra.mxu0 0
        %389 = vmatprep.subr.bf16.mxu0 0
        %390 = vmatpush2.bf16.msra.mxu0 0
        %391 = vmatprep.subr.bf16.mxu0 0
        %392 = vmatpush2.bf16.msra.mxu0 0
        %393 = vmatprep.mubr.bf16.mxu0 0
        %394 = vmatmul.mubr.bf16.gmra.mxu0 %v314
        %v395 = vpop.f32.mrf.mxu0
        %v396 = vadd.f32 0.0, %v395
        %v397 = vpop.f32.mrf.mxu0
        %v398 = vpop.f32.mrf.mxu0
        %v399 = vadd.f32 0.0, %v398
        %v400 = vpop.f32.mrf.mxu0
        %401 = vmatprep.mubr.bf16.mxu0 0
        %402 = vmatmul.mubr.bf16.gmra.mxu0 %v317
        %v403 = vpop.f32.mrf.mxu0
        %v404 = vadd.f32 0.0, %v403
        %v405 = vpop.f32.mrf.mxu0
        %v406 = vpop.f32.mrf.mxu0
        %v407 = vadd.f32 0.0, %v406
        %v408 = vpop.f32.mrf.mxu0
        %409 = vmatprep.mubr.bf16.mxu0 0
        %410 = vmatmul.mubr.bf16.gmra.mxu0 %v320
        %v411 = vpop.f32.mrf.mxu0
        %v412 = vadd.f32 0.0, %v411
        %v413 = vpop.f32.mrf.mxu0
        %v414 = vpop.f32.mrf.mxu0
        %v415 = vadd.f32 0.0, %v414
        %v416 = vpop.f32.mrf.mxu0
        %417 = vmatprep.mubr.bf16.mxu0 0
        %418 = vmatmul.mubr.bf16.gmra.mxu0 %v323
        %v419 = vpop.f32.mrf.mxu0
        %v420 = vadd.f32 0.0, %v419
        %v421 = vpop.f32.mrf.mxu0
        %v422 = vpop.f32.mrf.mxu0
        %v423 = vadd.f32 0.0, %v422
        %v424 = vpop.f32.mrf.mxu0
        %425 = vmatprep.mubr.bf16.mxu0 0
        %426 = vmatmul.mubr.bf16.gmra.mxu0 %v326
        %v427 = vpop.f32.mrf.mxu0
        %v428 = vadd.f32 0.0, %v427
        %v429 = vpop.f32.mrf.mxu0
        %v430 = vpop.f32.mrf.mxu0
        %v431 = vadd.f32 0.0, %v430
        %v432 = vpop.f32.mrf.mxu0
        %433 = vmatprep.mubr.bf16.mxu0 0
        %434 = vmatmul.mubr.bf16.gmra.mxu0 %v329
        %v435 = vpop.f32.mrf.mxu0
        %v436 = vadd.f32 0.0, %v435
        %v437 = vpop.f32.mrf.mxu0
        %v438 = vpop.f32.mrf.mxu0
        %v439 = vadd.f32 0.0, %v438
        %v440 = vpop.f32.mrf.mxu0
        %441 = vmatprep.mubr.bf16.mxu0 0
        %442 = vmatmul.mubr.bf16.gmra.mxu0 %v332
        %v443 = vpop.f32.mrf.mxu0
        %v444 = vadd.f32 0.0, %v443
        %v445 = vpop.f32.mrf.mxu0
        %v446 = vpop.f32.mrf.mxu0
        %v447 = vadd.f32 0.0, %v446
        %v448 = vpop.f32.mrf.mxu0
        %449 = vmatprep.mubr.bf16.mxu0 0
        %450 = vmatmul.mubr.bf16.gmra.mxu0 %v335
        %v451 = vpop.f32.mrf.mxu0
        %v452 = vadd.f32 0.0, %v451
        %v453 = vpop.f32.mrf.mxu0
        %v454 = vpop.f32.mrf.mxu0
        %v455 = vadd.f32 0.0, %v454
        %v456 = vpop.f32.mrf.mxu0
        %457 = vmatprep.mubr.bf16.mxu0 0
        %458 = vmatmul.mubr.bf16.gmra.mxu0 %v338
        %v459 = vpop.f32.mrf.mxu0
        %v460 = vadd.f32 0.0, %v459
        %v461 = vpop.f32.mrf.mxu0
        %v462 = vpop.f32.mrf.mxu0
        %v463 = vadd.f32 0.0, %v462
        %v464 = vpop.f32.mrf.mxu0
        %465 = vmatprep.mubr.bf16.mxu0 0
        %466 = vmatmul.mubr.bf16.gmra.mxu0 %v341
        %v467 = vpop.f32.mrf.mxu0
        %v468 = vadd.f32 0.0, %v467
        %v469 = vpop.f32.mrf.mxu0
        %v470 = vpop.f32.mrf.mxu0
        %v471 = vadd.f32 0.0, %v470
        %v472 = vpop.f32.mrf.mxu0
        %473 = vmatprep.mubr.bf16.mxu0 0
        %474 = vmatmul.mubr.bf16.gmra.mxu0 %v344
        %v475 = vpop.f32.mrf.mxu0
        %v476 = vadd.f32 0.0, %v475
        %v477 = vpop.f32.mrf.mxu0
        %v478 = vpop.f32.mrf.mxu0
        %v479 = vadd.f32 0.0, %v478
        %v480 = vpop.f32.mrf.mxu0
        %481 = vmatprep.mubr.bf16.mxu0 0
        %482 = vmatmul.mubr.bf16.gmra.mxu0 %v347
        %v483 = vpop.f32.mrf.mxu0
        %v484 = vadd.f32 0.0, %v483
        %v485 = vpop.f32.mrf.mxu0
        %v486 = vpop.f32.mrf.mxu0
        %v487 = vadd.f32 0.0, %v486
        %v488 = vpop.f32.mrf.mxu0
        %489 = vmatprep.mubr.bf16.mxu0 0
        %490 = vmatmul.mubr.bf16.gmra.mxu0 %v350
        %v491 = vpop.f32.mrf.mxu0
        %v492 = vadd.f32 0.0, %v491
        %v493 = vpop.f32.mrf.mxu0
        %v494 = vpop.f32.mrf.mxu0
        %v495 = vadd.f32 0.0, %v494
        %v496 = vpop.f32.mrf.mxu0
        %497 = vmatprep.mubr.bf16.mxu0 0
        %498 = vmatmul.mubr.bf16.gmra.mxu0 %v353
        %v499 = vpop.f32.mrf.mxu0
        %v500 = vadd.f32 0.0, %v499
        %v501 = vpop.f32.mrf.mxu0
        %v502 = vpop.f32.mrf.mxu0
        %v503 = vadd.f32 0.0, %v502
        %v504 = vpop.f32.mrf.mxu0
        %505 = vmatprep.mubr.bf16.mxu0 0
        %506 = vmatmul.mubr.bf16.gmra.mxu0 %v356
        %v507 = vpop.f32.mrf.mxu0
        %v508 = vadd.f32 0.0, %v507
        %v509 = vpop.f32.mrf.mxu0
        %v510 = vpop.f32.mrf.mxu0
        %v511 = vadd.f32 0.0, %v510
        %v512 = vpop.f32.mrf.mxu0
        %513 = vmatprep.mubr.bf16.mxu0 0
        %514 = vmatmul.mubr.bf16.gmra.mxu0 %v359
        %v515 = vpop.f32.mrf.mxu0
        %v516 = vadd.f32 0.0, %v515
        %v517 = vpop.f32.mrf.mxu0
        %v518 = vpop.f32.mrf.mxu0
        %v519 = vadd.f32 0.0, %v518
        %v520 = vpop.f32.mrf.mxu0
        %521 = vdwg.mxu0
        %v522 = vmul.f32 %v396, %v396
        %v523 = vmul.f32 %v399, %v399
        %v524 = vmul.f32 %v404, %v404
        %v525 = vmul.f32 %v407, %v407
        %v526 = vmul.f32 %v412, %v412
        %v527 = vmul.f32 %v415, %v415
        %v528 = vmul.f32 %v420, %v420
        %v529 = vmul.f32 %v423, %v423
        %v530 = vmul.f32 %v428, %v428
        %v531 = vmul.f32 %v431, %v431
        %v532 = vmul.f32 %v436, %v436
        %v533 = vmul.f32 %v439, %v439
        %v534 = vmul.f32 %v444, %v444
        %v535 = vmul.f32 %v447, %v447
        %v536 = vmul.f32 %v452, %v452
        %v537 = vmul.f32 %v455, %v455
        %v538 = vmul.f32 %v460, %v460
        %v539 = vmul.f32 %v463, %v463
        %v540 = vmul.f32 %v468, %v468
        %v541 = vmul.f32 %v471, %v471
        %v542 = vmul.f32 %v476, %v476
        %v543 = vmul.f32 %v479, %v479
        %v544 = vmul.f32 %v484, %v484
        %v545 = vmul.f32 %v487, %v487
        %v546 = vmul.f32 %v492, %v492
        %v547 = vmul.f32 %v495, %v495
        %v548 = vmul.f32 %v500, %v500
        %v549 = vmul.f32 %v503, %v503
        %v550 = vmul.f32 %v508, %v508
        %v551 = vmul.f32 %v511, %v511
        %v552 = vmul.f32 %v516, %v516
        %v553 = vmul.f32 %v519, %v519
        %v554 = vadd.f32 %v522, %v538
        %v555 = vadd.f32 %v523, %v539
        %v556 = vadd.f32 %v524, %v540
        %v557 = vadd.f32 %v525, %v541
        %v558 = vadd.f32 %v526, %v542
        %v559 = vadd.f32 %v527, %v543
        %v560 = vadd.f32 %v528, %v544
        %v561 = vadd.f32 %v529, %v545
        %v562 = vadd.f32 %v530, %v546
        %v563 = vadd.f32 %v531, %v547
        %v564 = vadd.f32 %v532, %v548
        %v565 = vadd.f32 %v533, %v549
        %v566 = vadd.f32 %v534, %v550
        %v567 = vadd.f32 %v535, %v551
        %v568 = vadd.f32 %v536, %v552
        %v569 = vadd.f32 %v537, %v553
        %v570 = vrsqrt.pop %v554
        %v571 = vmul.f32 %v554, %v570
        %vm572 = vcmp.eq.f32.partialorder %v554, inf
        %v573 = vsel %vm572, %v554, %v571
        %vm574 = vcmp.eq.f32.partialorder %v554, 0.0
        %v575 = vand.u32 %v554, 2147483648
        %v576 = vsel %vm574, %v575, %v573
        %v577 = vrsqrt.pop %v555
        %v578 = vmul.f32 %v555, %v577
        %vm579 = vcmp.eq.f32.partialorder %v555, inf
        %v580 = vsel %vm579, %v555, %v578
        %vm581 = vcmp.eq.f32.partialorder %v555, 0.0
        %v582 = vand.u32 %v555, 2147483648
        %v583 = vsel %vm581, %v582, %v580
        %v584 = vrsqrt.pop %v556
        %v585 = vmul.f32 %v556, %v584
        %vm586 = vcmp.eq.f32.partialorder %v556, inf
        %v587 = vsel %vm586, %v556, %v585
        %vm588 = vcmp.eq.f32.partialorder %v556, 0.0
        %v589 = vand.u32 %v556, 2147483648
        %v590 = vsel %vm588, %v589, %v587
        %v591 = vrsqrt.pop %v557
        %v592 = vmul.f32 %v557, %v591
        %vm593 = vcmp.eq.f32.partialorder %v557, inf
        %v594 = vsel %vm593, %v557, %v592
        %vm595 = vcmp.eq.f32.partialorder %v557, 0.0
        %v596 = vand.u32 %v557, 2147483648
        %v597 = vsel %vm595, %v596, %v594
        %v598 = vrsqrt.pop %v558
        %v599 = vmul.f32 %v558, %v598
        %vm600 = vcmp.eq.f32.partialorder %v558, inf
        %v601 = vsel %vm600, %v558, %v599
        %vm602 = vcmp.eq.f32.partialorder %v558, 0.0
        %v603 = vand.u32 %v558, 2147483648
        %v604 = vsel %vm602, %v603, %v601
        %v605 = vrsqrt.pop %v559
        %v606 = vmul.f32 %v559, %v605
        %vm607 = vcmp.eq.f32.partialorder %v559, inf
        %v608 = vsel %vm607, %v559, %v606
        %vm609 = vcmp.eq.f32.partialorder %v559, 0.0
        %v610 = vand.u32 %v559, 2147483648
        %v611 = vsel %vm609, %v610, %v608
        %v612 = vrsqrt.pop %v560
        %v613 = vmul.f32 %v560, %v612
        %vm614 = vcmp.eq.f32.partialorder %v560, inf
        %v615 = vsel %vm614, %v560, %v613
        %vm616 = vcmp.eq.f32.partialorder %v560, 0.0
        %v617 = vand.u32 %v560, 2147483648
        %v618 = vsel %vm616, %v617, %v615
        %v619 = vrsqrt.pop %v561
        %v620 = vmul.f32 %v561, %v619
        %vm621 = vcmp.eq.f32.partialorder %v561, inf
        %v622 = vsel %vm621, %v561, %v620
        %vm623 = vcmp.eq.f32.partialorder %v561, 0.0
        %v624 = vand.u32 %v561, 2147483648
        %v625 = vsel %vm623, %v624, %v622
        %v626 = vrsqrt.pop %v562
        %v627 = vmul.f32 %v562, %v626
        %vm628 = vcmp.eq.f32.partialorder %v562, inf
        %v629 = vsel %vm628, %v562, %v627
        %vm630 = vcmp.eq.f32.partialorder %v562, 0.0
        %v631 = vand.u32 %v562, 2147483648
        %v632 = vsel %vm630, %v631, %v629
        %v633 = vrsqrt.pop %v563
        %v634 = vmul.f32 %v563, %v633
        %vm635 = vcmp.eq.f32.partialorder %v563, inf
        %v636 = vsel %vm635, %v563, %v634
        %vm637 = vcmp.eq.f32.partialorder %v563, 0.0
        %v638 = vand.u32 %v563, 2147483648
        %v639 = vsel %vm637, %v638, %v636
        %v640 = vrsqrt.pop %v564
        %v641 = vmul.f32 %v564, %v640
        %vm642 = vcmp.eq.f32.partialorder %v564, inf
        %v643 = vsel %vm642, %v564, %v641
        %vm644 = vcmp.eq.f32.partialorder %v564, 0.0
        %v645 = vand.u32 %v564, 2147483648
        %v646 = vsel %vm644, %v645, %v643
        %v647 = vrsqrt.pop %v565
        %v648 = vmul.f32 %v565, %v647
        %vm649 = vcmp.eq.f32.partialorder %v565, inf
        %v650 = vsel %vm649, %v565, %v648
        %vm651 = vcmp.eq.f32.partialorder %v565, 0.0
        %v652 = vand.u32 %v565, 2147483648
        %v653 = vsel %vm651, %v652, %v650
        %v654 = vrsqrt.pop %v566
        %v655 = vmul.f32 %v566, %v654
        %vm656 = vcmp.eq.f32.partialorder %v566, inf
        %v657 = vsel %vm656, %v566, %v655
        %vm658 = vcmp.eq.f32.partialorder %v566, 0.0
        %v659 = vand.u32 %v566, 2147483648
        %v660 = vsel %vm658, %v659, %v657
        %v661 = vrsqrt.pop %v567
        %v662 = vmul.f32 %v567, %v661
        %vm663 = vcmp.eq.f32.partialorder %v567, inf
        %v664 = vsel %vm663, %v567, %v662
        %vm665 = vcmp.eq.f32.partialorder %v567, 0.0
        %v666 = vand.u32 %v567, 2147483648
        %v667 = vsel %vm665, %v666, %v664
        %v668 = vrsqrt.pop %v568
        %v669 = vmul.f32 %v568, %v668
        %vm670 = vcmp.eq.f32.partialorder %v568, inf
        %v671 = vsel %vm670, %v568, %v669
        %vm672 = vcmp.eq.f32.partialorder %v568, 0.0
        %v673 = vand.u32 %v568, 2147483648
        %v674 = vsel %vm672, %v673, %v671
        %v675 = vrsqrt.pop %v569
        %v676 = vmul.f32 %v569, %v675
        %vm677 = vcmp.eq.f32.partialorder %v569, inf
        %v678 = vsel %vm677, %v569, %v676
        %vm679 = vcmp.eq.f32.partialorder %v569, 0.0
        %v680 = vand.u32 %v569, 2147483648
        %v681 = vsel %vm679, %v680, %v678
        %682 = vst [vmem:[%s158] sm:$0xff] %v576
        %683 = vst [vmem:[%s158 + $0x8] sm:$0xff] %v583
        %684 = vst [vmem:[%s158 + $0x10] sm:$0xff] %v590
        %685 = vst [vmem:[%s158 + $0x18] sm:$0xff] %v597
        %686 = vst [vmem:[%s158 + $0x20] sm:$0xff] %v604
        %687 = vst [vmem:[%s158 + $0x28] sm:$0xff] %v611
        %688 = vst [vmem:[%s158 + $0x30] sm:$0xff] %v618
        %689 = vst [vmem:[%s158 + $0x38] sm:$0xff] %v625
        %690 = vst [vmem:[%s158 + $0x40] sm:$0xff] %v632
        %691 = vst [vmem:[%s158 + $0x48] sm:$0xff] %v639
        %692 = vst [vmem:[%s158 + $0x50] sm:$0xff] %v646
        %693 = vst [vmem:[%s158 + $0x58] sm:$0xff] %v653
        %694 = vst [vmem:[%s158 + $0x60] sm:$0xff] %v660
        %695 = vst [vmem:[%s158 + $0x68] sm:$0xff] %v667
        %696 = vst [vmem:[%s158 + $0x70] sm:$0xff] %v674
        %697 = vst [vmem:[%s158 + $0x78] sm:$0xff] %v681
        %s698 = sand.u32 %s87, 1
        %s699 = scalar_lea.sflag [#allocation3], %s698
        %s700 = sand.u32 %s87, 1
        %s701 = smul.addr %s700, 128
        %s702 = scalar_lea.vmem [#allocation2], %s701
        // Predicated region
        $region29: #{tpu_custom_call.1} parent=27 // pred_check
          %p703 = pneg %p97
        $region30: #{tpu_custom_call.1} parent=27 // pred_check_branch
          %705 = sbr.rel (%p703) target = $region32
        $region31: #{tpu_custom_call.1} parent=27 // pred_region
          %s707 = ssub.s32 2048, 2048
          %708 = vsyncadd %s699, %s707
          %s709 = smul.addr %s20, 16
          %s710 = sadd.s32 %s21, %s709
          %s711 = smul.addr %s710, 128
          %s712 = scalar_lea.hbm %s2, %s711
          %s713 = sshll.u32 %s702, 4
          %s714 = int_to_ptr.vmem [resolvable:$true] %s713
          %719 = dma.vmem_to_hbm [thread:$0]  %s714, 2048, %s712, %s699, 128, 128, 8
        $region32: #{tpu_custom_call.1} parent=27 // pred_fallthru
          _
      $region28: #{tpu_custom_call.1} parent=5 // pred_fallthru
        _
      %p720 = scmp.le.s32.totalorder 2, %s11
      // Predicated region
      $region33: #{tpu_custom_call.1} parent=5 // pred_check
        %p721 = pneg %p720
      $region34: #{tpu_custom_call.1} parent=5 // pred_check_branch
        %723 = sbr.rel (%p721) target = $region36
      $region35: #{tpu_custom_call.1} parent=5 // pred_region
        %s724 = ssub.s32 %s11, 2
        // Predicated region
        $region37: #{tpu_custom_call.1} parent=35 // pred_check
          %p725 = pneg %p103
        $region38: #{tpu_custom_call.1} parent=35 // pred_check_branch
          %727 = sbr.rel (%p725) target = $region40
        $region39: #{tpu_custom_call.1} parent=35 // pred_region
          %s728 = sand.u32 %s88, 1
          %s729 = scalar_lea.sflag [#allocation3], %s728
          %s730 = sand.u32 %s88, 1
          %s731 = smul.addr %s730, 128
          %s732 = scalar_lea.vmem [#allocation2], %s731
          %733 = dma.done %s729, 2048
        $region40: #{tpu_custom_call.1} parent=35 // pred_fallthru
          _
      $region36: #{tpu_custom_call.1} parent=5 // pred_fallthru
        _
    $region6: #{tpu_custom_call.1} parent=1 // loop_footer
      %s15 = sadd.s32 1, %s11
    $region7: #{tpu_custom_call.1} parent=1 // loop_footer_branch
      %10 = sbr.rel target = $region3
    $region8: #{tpu_custom_call.1} parent=1 // loop_exit
      _
    %734 = vsyncpa [#allocation3], 1
    %s735 = scalar_lea.sflag [#allocation3], 1
    %736 = vsyncpa %s735, 1

</llo_original>
